<compile_context>
chip_gen: v7x
topology: tpu7x:2x2x1
jax: 0.10.0
libtpu: 0.0.40
codegen_flags: <defaults>
</compile_context>

<pallas_src>
import jax
import jax.numpy as jnp
import numpy as np
from jax import lax
from jax.experimental import pallas as pl
from jax.experimental.pallas import tpu as pltpu


def _round_up(x, m):
    return (x + m - 1) // m * m


def create_position_ids_from_input_ids(input_ids, padding_idx):
    """JAX port of the fairseq-style position-id helper (glue, not hot path)."""
    mask = (input_ids != padding_idx).astype(jnp.int32)
    incremental = jnp.cumsum(mask, axis=1).astype(jnp.int32) * mask
    return incremental + padding_idx


def pack_embedding_tables(word_table, pos_table, type_table):
    """One-time (model-load) packing.

    * Pads the hidden dim to a multiple of 128 (lane-dense blocks/stores).
      Doing this once here avoids re-copying the whole (vocab, hidden) word
      table through HBM on every forward call.
    * Concatenates [pos_table; type_table] into one small VMEM-resident table
      so position + token-type rows come from a single fused one-hot matmul.
    * Pads the combined row count to a multiple of 8 (sublane-dense).
    """
    V, H = word_table.shape
    max_pos = pos_table.shape[0]
    n_types = type_table.shape[0]
    Hp = _round_up(H, 128)
    if Hp != H:
        padh = ((0, 0), (0, Hp - H))
        word_table = jnp.pad(word_table, padh)
        pos_table = jnp.pad(pos_table, padh)
        type_table = jnp.pad(type_table, padh)
    comb = jnp.concatenate([pos_table, type_table], axis=0)
    C = _round_up(max_pos + n_types, 8)
    if C != comb.shape[0]:
        comb = jnp.pad(comb, ((0, C - comb.shape[0]), (0, 0)))
    return dict(word=word_table, comb=comb, V=V, H=H, Hp=Hp,
                max_pos=max_pos, n_types=n_types)


def _embed_kernel(wid_ref,                  # SMEM prefetch: (n_pad,) int32 word ids
                  ids_ref,                  # VMEM (T, 2) int32 [pos id, max_pos + type id]
                  comb_ref,                 # VMEM (C, Hp) [pos_table; type_table] resident
                  word_hbm,                 # HBM (V, Hp) word table (pl.ANY)
                  o_ref,                    # VMEM (T, Hp) output block
                  wbuf, sem):               # scratch: VMEM (T, Hp), scalar DMA sem
    i = pl.program_id(0)
    T, Hp = o_ref.shape
    C = comb_ref.shape[0]
    base = i * T

    # ---- Gather this chunk's T word rows: T row DMAs, issued 8 per visible
    # iteration (manual partial unroll -> id loads + descriptor pushes can
    # co-issue), then a SINGLE aggregate wait later.
    UNROLL = 8                              # T is always a multiple of 8

    def issue8(g, carry):
        t0 = g * UNROLL
        for u in range(UNROLL):             # static -> fully visible to scheduler
            t = t0 + u
            row = wid_ref[base + t]         # scalar read from SMEM
            pltpu.make_async_copy(
                word_hbm.at[pl.ds(row, 1), :],      # (1, Hp) HBM row
                wbuf.at[pl.ds(t, 1), :],            # (1, Hp) VMEM destination
                sem,
            ).start()
        return carry

    lax.fori_loop(0, T // UNROLL, issue8, 0)

    # ---- Fused position + token-type gather while the word-row DMAs fly.
    # One one-hot matmul against the combined [pos; type] table; two hits per
    # row (pos id and max_pos+type id).  Tiled over the C rows in 128-wide
    # slabs so the int32 iota / one-hot intermediates stay vreg-sized.
    idx = ids_ref[...]                      # (T, 2) int32
    pid_col = idx[:, 0:1]                   # (T, 1) position id
    tid_col = idx[:, 1:2]                   # (T, 1) combined token-type row index
    acc = jnp.zeros((T, Hp), jnp.float32)
    SLAB = 128
    for s0 in range(0, C, SLAB):            # static Python loop (C is static)
        sl = min(SLAB, C - s0)              # multiple of 8 (C padded to 8)
        lane = lax.broadcasted_iota(jnp.int32, (T, sl), 1) + s0
        oh = jnp.logical_or(pid_col == lane, tid_col == lane).astype(comb_ref.dtype)
        # precision=HIGHEST keeps the f32 one-hot gather exact on the MXU; the
        # table stays in its native dtype (no per-step astype of the table).
        acc = acc + jnp.dot(oh, comb_ref[pl.ds(s0, sl), :],
                            preferred_element_type=jnp.float32,
                            precision=lax.Precision.HIGHEST)

    # ---- Single aggregate wait: the T row copies' semaphore counts sum to
    # exactly one (T, Hp) transfer.  src=dst=wbuf only supplies the size and
    # semaphore (descriptor is never started), so it never depends on V >= T.
    pltpu.make_async_copy(wbuf, wbuf, sem).wait()

    o_ref[...] = (wbuf[...].astype(jnp.float32) + acc).astype(o_ref.dtype)


def text_embeddings_forward(input_ids, packed, position_ids=None,
                            token_type_ids=None, chunk_tokens=512):
    """packed = pack_embedding_tables(word_table, pos_table, type_table)."""
    B, S = input_ids.shape
    V, H, Hp = packed["V"], packed["H"], packed["Hp"]
    max_pos, n_types = packed["max_pos"], packed["n_types"]
    word_table, comb_table = packed["word"], packed["comb"]
    C = comb_table.shape[0]

    if position_ids is None:
        position_ids = create_position_ids_from_input_ids(input_ids, 0)
    if token_type_ids is None:
        token_type_ids = jnp.zeros_like(input_ids)

    n_tok = B * S
    # Tokens per grid step: multiple of 8 for sublane-dense blocks.
    T = max(8, min(int(chunk_tokens), _round_up(n_tok, 8)))
    T = _round_up(T, 8)
    n_chunks = pl.cdiv(n_tok, T)
    n_pad = n_chunks * T

    # Flatten ids; clamp defensively so a bad id never drives an OOB DMA.
    wid = jnp.clip(input_ids.reshape(-1).astype(jnp.int32), 0, V - 1)
    pid = jnp.clip(position_ids.reshape(-1).astype(jnp.int32), 0, max_pos - 1)
    tid = jnp.clip(token_type_ids.reshape(-1).astype(jnp.int32), 0, n_types - 1)
    if n_pad != n_tok:
        padw = (0, n_pad - n_tok)
        wid = jnp.pad(wid, padw)     # padded tail tokens gather row 0 (sliced off)
        pid = jnp.pad(pid, padw)
        tid = jnp.pad(tid, padw)

    # One (T, 2) int32 block per step: col 0 = position id, col 1 = row index
    # of the token-type embedding inside the combined [pos; type] table.
    ids2 = jnp.stack([pid, max_pos + tid], axis=1)        # (n_pad, 2)

    grid_spec = pltpu.PrefetchScalarGridSpec(
        num_scalar_prefetch=1,                    # word ids -> SMEM (drive DMA gather)
        grid=(n_chunks,),
        in_specs=[
            pl.BlockSpec((T, 2), lambda i, wid_ref: (i, 0)),      # pos/type ids
            pl.BlockSpec((C, Hp), lambda i, wid_ref: (0, 0)),     # combined table, VMEM resident
            pl.BlockSpec(memory_space=pl.ANY),                    # word table stays in HBM
        ],
        out_specs=pl.BlockSpec((T, Hp), lambda i, wid_ref: (i, 0)),
        scratch_shapes=[
            pltpu.VMEM((T, Hp), word_table.dtype),                # gathered word rows
            pltpu.SemaphoreType.DMA,                              # single DMA semaphore
        ],
    )

    out_flat = pl.pallas_call(
        _embed_kernel,
        out_shape=jax.ShapeDtypeStruct((n_pad, Hp), word_table.dtype),
        grid_spec=grid_spec,
        compiler_params=pltpu.CompilerParams(
            # Each grid step is self-contained (issue + aggregate wait within
            # the step), so chunks may be sharded across TensorCores (v7x).
            dimension_semantics=("parallel",)),
    )(wid, ids2, comb_table, word_table)

    # nn.Dropout in eval mode is the identity; self.LayerNorm is never applied
    # in the reference forward, so neither appears here.
    # TODO(synk): training-mode dropout (random Bernoulli masking) not implemented.
    return out_flat[:n_tok, :H].reshape(B, S, H)


if __name__ == "__main__":
    # Small, deterministic synthetic config (mirrors the module's __init__ shapes).
    VOCAB = 64          # config.vocab_size
    MAX_POS = 32        # config.max_position_embeddings
    N_TYPES = 2         # token-type vocab of new_token_type_embeddings
    H = 32              # config.hidden_size
    B, S = 2, 8

    key = jax.random.PRNGKey(0)
    k_w, k_p, k_t, k_ids, k_tt = jax.random.split(key, 5)

    word_table = jax.random.normal(k_w, (VOCAB, H), dtype=jnp.float32) * 0.02
    # nn.Embedding(padding_idx=0) zeroes the padding row at init.
    word_table = word_table.at[0].set(0.0)
    pos_table = jax.random.normal(k_p, (MAX_POS, H), dtype=jnp.float32) * 0.02
    type_table = jax.random.normal(k_t, (N_TYPES, H), dtype=jnp.float32) * 0.02

    # input_ids with some padding (0) entries to exercise the position-id logic.
    input_ids = jax.random.randint(k_ids, (B, S), 1, VOCAB, dtype=jnp.int32)
    input_ids = input_ids.at[0, S - 2:].set(0)   # pad tail of first sequence
    input_ids = input_ids.at[1, S - 1:].set(0)   # pad tail of second sequence
    token_type_ids = jax.random.randint(k_tt, (B, S), 0, N_TYPES, dtype=jnp.int32)

    # Pure-JAX reference for verification.
    position_ids = create_position_ids_from_input_ids(input_ids, 0)
    ref = (word_table[input_ids]
           + pos_table[position_ids]
           + type_table[token_type_ids])

    # One-time table packing (model-load time), reused across forward calls.
    packed = pack_embedding_tables(word_table, pos_table, type_table)

    # Run 1: default chunking (single chunk for this tiny input).
    out1 = jax.block_until_ready(
        text_embeddings_forward(input_ids, packed, token_type_ids=token_type_ids))
    # Run 2: small chunk size to exercise the multi-chunk gather path.
    out2 = jax.block_until_ready(
        text_embeddings_forward(input_ids, packed, token_type_ids=token_type_ids,
                                chunk_tokens=8))

    np.testing.assert_allclose(np.asarray(out1), np.asarray(ref),
                               rtol=1e-6, atol=1e-6)
    np.testing.assert_allclose(np.asarray(out2), np.asarray(ref),
                               rtol=1e-6, atol=1e-6)
    assert out1.shape == (B, S, H) and out1.dtype == jnp.float32
    print("KERNEL_OK")
</pallas_src>

<mosaic_0001>
module attributes {stable_mosaic.version = 11 : i64} {
  func.func @_embed_kernel(%arg0: i32, %arg1: memref<16xi32, #tpu.memory_space<smem>>, %arg2: memref<16x2xi32, #tpu.memory_space<vmem>>, %arg3: memref<40x128xf32, #tpu.memory_space<vmem>>, %arg4: memref<64x128xf32, #tpu.memory_space<any>>, %arg5: memref<16x128xf32, #tpu.memory_space<vmem>>, %arg6: memref<16x128xf32, #tpu.memory_space<vmem>>, %arg7: memref<!tpu.dma_semaphore, #tpu.memory_space<semaphore_mem>>) attributes {dimension_semantics = [#tpu.dimension_semantics<parallel>], iteration_bounds = array<i64: 1>, scalar_prefetch = 1 : i64, scratch_operands = 2 : i64, tpu.core_type = #tpu.core_type<tc>, window_params = [{transform_indices = @transform_0, window_bounds = array<i64: 16, 2>}, {pipeline_mode = #tpu.pipeline_mode<synchronous>, transform_indices = @transform_1, window_bounds = array<i64: 40, 128>}, {}, {transform_indices = @transform_3, window_bounds = array<i64: 16, 128>}]} {
    %c16_i32 = arith.constant 16 : i32
    %0 = arith.muli %arg0, %c16_i32 : i32
    %c0_i32 = arith.constant 0 : i32
    %c2_i32 = arith.constant 2 : i32
    %1 = arith.addi %c0_i32, %c2_i32 : i32
    %c1_i32 = arith.constant 1 : i32
    scf.for %arg8 = %c0_i32 to %1 step %c1_i32  : i32 {
      %c8_i32 = arith.constant 8 : i32
      %22 = arith.muli %arg8, %c8_i32 : i32
      %c0_i32_10 = arith.constant 0 : i32
      %23 = arith.addi %22, %c0_i32_10 : i32
      %24 = arith.addi %0, %23 : i32
      %25 = arith.index_cast %24 : i32 to index
      %26 = memref.load %arg1[%25] : memref<16xi32, #tpu.memory_space<smem>>
      %c0_i32_11 = arith.constant 0 : i32
      %27 = tpu.memref_slice %arg4[%26, %c0_i32_11] : memref<64x128xf32, #tpu.memory_space<any>> -> memref<1x128xf32, #tpu.memory_space<any>>
      %c0_i32_12 = arith.constant 0 : i32
      %28 = tpu.memref_slice %arg6[%23, %c0_i32_12] : memref<16x128xf32, #tpu.memory_space<vmem>> -> memref<1x128xf32, #tpu.memory_space<vmem>>
      tpu.enqueue_dma source(%27 : memref<1x128xf32, #tpu.memory_space<any>>) target(%28 : memref<1x128xf32, #tpu.memory_space<vmem>>) target_semaphore(%arg7 : memref<!tpu.dma_semaphore, #tpu.memory_space<semaphore_mem>>)
      %c1_i32_13 = arith.constant 1 : i32
      %29 = arith.addi %22, %c1_i32_13 : i32
      %30 = arith.addi %0, %29 : i32
      %31 = arith.index_cast %30 : i32 to index
      %32 = memref.load %arg1[%31] : memref<16xi32, #tpu.memory_space<smem>>
      %c0_i32_14 = arith.constant 0 : i32
      %33 = tpu.memref_slice %arg4[%32, %c0_i32_14] : memref<64x128xf32, #tpu.memory_space<any>> -> memref<1x128xf32, #tpu.memory_space<any>>
      %c0_i32_15 = arith.constant 0 : i32
      %34 = tpu.memref_slice %arg6[%29, %c0_i32_15] : memref<16x128xf32, #tpu.memory_space<vmem>> -> memref<1x128xf32, #tpu.memory_space<vmem>>
      tpu.enqueue_dma source(%33 : memref<1x128xf32, #tpu.memory_space<any>>) target(%34 : memref<1x128xf32, #tpu.memory_space<vmem>>) target_semaphore(%arg7 : memref<!tpu.dma_semaphore, #tpu.memory_space<semaphore_mem>>)
      %c2_i32_16 = arith.constant 2 : i32
      %35 = arith.addi %22, %c2_i32_16 : i32
      %36 = arith.addi %0, %35 : i32
      %37 = arith.index_cast %36 : i32 to index
      %38 = memref.load %arg1[%37] : memref<16xi32, #tpu.memory_space<smem>>
      %c0_i32_17 = arith.constant 0 : i32
      %39 = tpu.memref_slice %arg4[%38, %c0_i32_17] : memref<64x128xf32, #tpu.memory_space<any>> -> memref<1x128xf32, #tpu.memory_space<any>>
      %c0_i32_18 = arith.constant 0 : i32
      %40 = tpu.memref_slice %arg6[%35, %c0_i32_18] : memref<16x128xf32, #tpu.memory_space<vmem>> -> memref<1x128xf32, #tpu.memory_space<vmem>>
      tpu.enqueue_dma source(%39 : memref<1x128xf32, #tpu.memory_space<any>>) target(%40 : memref<1x128xf32, #tpu.memory_space<vmem>>) target_semaphore(%arg7 : memref<!tpu.dma_semaphore, #tpu.memory_space<semaphore_mem>>)
      %c3_i32 = arith.constant 3 : i32
      %41 = arith.addi %22, %c3_i32 : i32
      %42 = arith.addi %0, %41 : i32
      %43 = arith.index_cast %42 : i32 to index
      %44 = memref.load %arg1[%43] : memref<16xi32, #tpu.memory_space<smem>>
      %c0_i32_19 = arith.constant 0 : i32
      %45 = tpu.memref_slice %arg4[%44, %c0_i32_19] : memref<64x128xf32, #tpu.memory_space<any>> -> memref<1x128xf32, #tpu.memory_space<any>>
      %c0_i32_20 = arith.constant 0 : i32
      %46 = tpu.memref_slice %arg6[%41, %c0_i32_20] : memref<16x128xf32, #tpu.memory_space<vmem>> -> memref<1x128xf32, #tpu.memory_space<vmem>>
      tpu.enqueue_dma source(%45 : memref<1x128xf32, #tpu.memory_space<any>>) target(%46 : memref<1x128xf32, #tpu.memory_space<vmem>>) target_semaphore(%arg7 : memref<!tpu.dma_semaphore, #tpu.memory_space<semaphore_mem>>)
      %c4_i32 = arith.constant 4 : i32
      %47 = arith.addi %22, %c4_i32 : i32
      %48 = arith.addi %0, %47 : i32
      %49 = arith.index_cast %48 : i32 to index
      %50 = memref.load %arg1[%49] : memref<16xi32, #tpu.memory_space<smem>>
      %c0_i32_21 = arith.constant 0 : i32
      %51 = tpu.memref_slice %arg4[%50, %c0_i32_21] : memref<64x128xf32, #tpu.memory_space<any>> -> memref<1x128xf32, #tpu.memory_space<any>>
      %c0_i32_22 = arith.constant 0 : i32
      %52 = tpu.memref_slice %arg6[%47, %c0_i32_22] : memref<16x128xf32, #tpu.memory_space<vmem>> -> memref<1x128xf32, #tpu.memory_space<vmem>>
      tpu.enqueue_dma source(%51 : memref<1x128xf32, #tpu.memory_space<any>>) target(%52 : memref<1x128xf32, #tpu.memory_space<vmem>>) target_semaphore(%arg7 : memref<!tpu.dma_semaphore, #tpu.memory_space<semaphore_mem>>)
      %c5_i32 = arith.constant 5 : i32
      %53 = arith.addi %22, %c5_i32 : i32
      %54 = arith.addi %0, %53 : i32
      %55 = arith.index_cast %54 : i32 to index
      %56 = memref.load %arg1[%55] : memref<16xi32, #tpu.memory_space<smem>>
      %c0_i32_23 = arith.constant 0 : i32
      %57 = tpu.memref_slice %arg4[%56, %c0_i32_23] : memref<64x128xf32, #tpu.memory_space<any>> -> memref<1x128xf32, #tpu.memory_space<any>>
      %c0_i32_24 = arith.constant 0 : i32
      %58 = tpu.memref_slice %arg6[%53, %c0_i32_24] : memref<16x128xf32, #tpu.memory_space<vmem>> -> memref<1x128xf32, #tpu.memory_space<vmem>>
      tpu.enqueue_dma source(%57 : memref<1x128xf32, #tpu.memory_space<any>>) target(%58 : memref<1x128xf32, #tpu.memory_space<vmem>>) target_semaphore(%arg7 : memref<!tpu.dma_semaphore, #tpu.memory_space<semaphore_mem>>)
      %c6_i32 = arith.constant 6 : i32
      %59 = arith.addi %22, %c6_i32 : i32
      %60 = arith.addi %0, %59 : i32
      %61 = arith.index_cast %60 : i32 to index
      %62 = memref.load %arg1[%61] : memref<16xi32, #tpu.memory_space<smem>>
      %c0_i32_25 = arith.constant 0 : i32
      %63 = tpu.memref_slice %arg4[%62, %c0_i32_25] : memref<64x128xf32, #tpu.memory_space<any>> -> memref<1x128xf32, #tpu.memory_space<any>>
      %c0_i32_26 = arith.constant 0 : i32
      %64 = tpu.memref_slice %arg6[%59, %c0_i32_26] : memref<16x128xf32, #tpu.memory_space<vmem>> -> memref<1x128xf32, #tpu.memory_space<vmem>>
      tpu.enqueue_dma source(%63 : memref<1x128xf32, #tpu.memory_space<any>>) target(%64 : memref<1x128xf32, #tpu.memory_space<vmem>>) target_semaphore(%arg7 : memref<!tpu.dma_semaphore, #tpu.memory_space<semaphore_mem>>)
      %c7_i32 = arith.constant 7 : i32
      %65 = arith.addi %22, %c7_i32 : i32
      %66 = arith.addi %0, %65 : i32
      %67 = arith.index_cast %66 : i32 to index
      %68 = memref.load %arg1[%67] : memref<16xi32, #tpu.memory_space<smem>>
      %c0_i32_27 = arith.constant 0 : i32
      %69 = tpu.memref_slice %arg4[%68, %c0_i32_27] : memref<64x128xf32, #tpu.memory_space<any>> -> memref<1x128xf32, #tpu.memory_space<any>>
      %c0_i32_28 = arith.constant 0 : i32
      %70 = tpu.memref_slice %arg6[%65, %c0_i32_28] : memref<16x128xf32, #tpu.memory_space<vmem>> -> memref<1x128xf32, #tpu.memory_space<vmem>>
      tpu.enqueue_dma source(%69 : memref<1x128xf32, #tpu.memory_space<any>>) target(%70 : memref<1x128xf32, #tpu.memory_space<vmem>>) target_semaphore(%arg7 : memref<!tpu.dma_semaphore, #tpu.memory_space<semaphore_mem>>)
    }
    %c2_i32_0 = arith.constant 2 : i32
    %c0 = arith.constant 0 : index
    %c0_1 = arith.constant 0 : index
    %2 = vector.load %arg2[%c0, %c0_1] : memref<16x2xi32, #tpu.memory_space<vmem>>, vector<16x2xi32>
    %3 = vector.extract_strided_slice %2 {offsets = [0, 0], sizes = [16, 1], strides = [1, 1]} : vector<16x2xi32> to vector<16x1xi32>
    %4 = vector.extract_strided_slice %2 {offsets = [0, 1], sizes = [16, 1], strides = [1, 1]} : vector<16x2xi32> to vector<16x1xi32>
    %cst = arith.constant 0.000000e+00 : f32
    %5 = vector.broadcast %cst : f32 to vector<16x128xf32>
    %6 = tpu.iota {dimensions = array<i32: 1>} : vector<16x40xi32>
    %c0_i32_2 = arith.constant 0 : i32
    %7 = vector.broadcast %c0_i32_2 : i32 to vector<16x40xi32>
    %8 = arith.addi %6, %7 : vector<16x40xi32>
    %9 = vector.broadcast %3 : vector<16x1xi32> to vector<16x40xi32>
    %10 = arith.cmpi eq, %9, %8 : vector<16x40xi32>
    %11 = vector.broadcast %4 : vector<16x1xi32> to vector<16x40xi32>
    %12 = arith.cmpi eq, %11, %8 : vector<16x40xi32>
    %13 = arith.ori %10, %12 : vector<16x40xi1>
    %14 = arith.extui %13 : vector<16x40xi1> to vector<16x40xi32>
    %15 = arith.sitofp %14 : vector<16x40xi32> to vector<16x40xf32>
    %c0_3 = arith.constant 0 : index
    %c0_4 = arith.constant 0 : index
    %16 = vector.load %arg3[%c0_3, %c0_4] : memref<40x128xf32, #tpu.memory_space<vmem>>, vector<40x128xf32>
    %cst_5 = arith.constant dense<0.000000e+00> : vector<16x128xf32>
    %17 = tpu.matmul %15, %16, %cst_5 {dimension_numbers = #tpu.dot_dimension_numbers<[1], [0], [0], [1], [0, 0, 1, 1], [], []>, precision = #tpu.contract_precision<fp32>} : vector<16x40xf32>, vector<40x128xf32>, vector<16x128xf32> -> vector<16x128xf32>
    %18 = arith.addf %5, %17 : vector<16x128xf32>
    tpu.wait_dma2 semaphore(%arg7 : memref<!tpu.dma_semaphore, #tpu.memory_space<semaphore_mem>>) src(%arg6 : memref<16x128xf32, #tpu.memory_space<vmem>>) dst(%arg6 : memref<16x128xf32, #tpu.memory_space<vmem>>)
    %c0_6 = arith.constant 0 : index
    %c0_7 = arith.constant 0 : index
    %19 = vector.load %arg6[%c0_6, %c0_7] : memref<16x128xf32, #tpu.memory_space<vmem>>, vector<16x128xf32>
    %20 = arith.addf %19, %18 : vector<16x128xf32>
    %c0_8 = arith.constant 0 : index
    %c0_9 = arith.constant 0 : index
    %21 = vector.load %arg5[%c0_8, %c0_9] : memref<16x128xf32, #tpu.memory_space<vmem>>, vector<16x128xf32>
    tpu.vector_store %arg5[%c0_8, %c0_9], %20 {strides = array<i32>} : memref<16x128xf32, #tpu.memory_space<vmem>>, vector<16x128xf32>,
    return
  }
  func.func @transform_0(%arg0: i32, %arg1: memref<16xi32, #tpu.memory_space<smem>>) -> (i32, i32) {
    %c0_i32 = arith.constant 0 : i32
    %c0_i32_0 = arith.constant 0 : i32
    return %arg0, %c0_i32 : i32, i32
  }
  func.func @transform_1(%arg0: i32, %arg1: memref<16xi32, #tpu.memory_space<smem>>) -> (i32, i32) {
    %c0_i32 = arith.constant 0 : i32
    %c0_i32_0 = arith.constant 0 : i32
    %c0_i32_1 = arith.constant 0 : i32
    return %c0_i32, %c0_i32_0 : i32, i32
  }
  func.func @transform_3(%arg0: i32, %arg1: memref<16xi32, #tpu.memory_space<smem>>) -> (i32, i32) {
    %c0_i32 = arith.constant 0 : i32
    %c0_i32_0 = arith.constant 0 : i32
    return %arg0, %c0_i32 : i32, i32
  }
}

</mosaic_0001>

<llo_original>
// kernel: tpu_custom_call.1
$region0: #{tpu_custom_call.1}
  #allocation0 [shape = 'u32[]', space=smem, size = 0x4, offset = 0x4, fixed_abs, tag = 'smem constant byte address 0x4 - core index']
  #allocation1 [shape = 'u32[144,128]{1,0:T(1,128)}', space=vmem, size = 0x12000, scoped, tag = 'internal scratch']
  #allocation2 [shape = 'f32[16,128]{1,0:T(8,128)}', space=vmem, size = 0x2000, scoped, tag = 'scratch operand']
  #allocation3 [shape = 's32[1]{0}', space=sflag, size = 0x4, scoped, tag = 'scratch operand']
  #allocation4 [shape = 's32[1]{0}', space=sflag, size = 0x4, scoped, tag = 'scoped memory for tpu_custom_call.1']
  #allocation5 [shape = 'u8[512]{0}', space=smem, size = 0x200, scoped, tag = 'prefetched SMEM operand 0']
  #allocation10 [shape = 's32[]', space=sflag, size = 0x4, offset = 0, fixed_abs, tag = 'sflag constant byte address 0x0 - dummy sync flag']
  #allocation11 [shape = 's32[]', space=sflag, size = 0x4, offset = 0, fixed_abs, tag = 'sflag constant byte address 0x0 - dummy sync flag']
  #allocation12 [shape = 'u32[]', space=smem, size = 0x4, offset = 0x44, fixed_abs, tag = 'smem constant byte address 0x44 - assertion arg 0']
  #allocation13 [shape = 'u32[]', space=smem, size = 0x4, offset = 0x48, fixed_abs, tag = 'smem constant byte address 0x48 - assertion arg 1']
  #allocation14 [shape = 's32[]', space=sflag, size = 0x4, offset = 0, fixed_abs, tag = 'sflag constant byte address 0x0 - dummy sync flag']
  #allocation15 [shape = 's32[]', space=sflag, size = 0x4, offset = 0, fixed_abs, tag = 'sflag constant byte address 0x0 - dummy sync flag']
  #allocation16 [shape = 's32[]', space=sflag, size = 0x4, offset = 0, fixed_abs, tag = 'sflag constant byte address 0x0 - dummy sync flag']
  #allocation17 [shape = 's32[]', space=sflag, size = 0x4, offset = 0, fixed_abs, tag = 'sflag constant byte address 0x0 - dummy sync flag']
  #allocation18 [shape = 's32[]', space=sflag, size = 0x4, offset = 0, fixed_abs, tag = 'sflag constant byte address 0x0 - dummy sync flag']
  #allocation19 [shape = 's32[]', space=sflag, size = 0x4, offset = 0, fixed_abs, tag = 'sflag constant byte address 0x0 - dummy sync flag']
  #allocation20 [shape = 's32[]', space=sflag, size = 0x4, offset = 0, fixed_abs, tag = 'sflag constant byte address 0x0 - dummy sync flag']
  #allocation21 [shape = 's32[]', space=sflag, size = 0x4, offset = 0, fixed_abs, tag = 'sflag constant byte address 0x0 - dummy sync flag']
  #allocation22 [shape = 's32[]', space=sflag, size = 0x4, offset = 0, fixed_abs, tag = 'sflag constant byte address 0x0 - dummy sync flag']
  #allocation23 [shape = 's32[]', space=sflag, size = 0x4, offset = 0, fixed_abs, tag = 'sflag constant byte address 0x0 - dummy sync flag']
  #allocation24 [shape = 's32[]', space=sflag, size = 0x4, offset = 0, fixed_abs, tag = 'sflag constant byte address 0x0 - dummy sync flag']
  #allocation25 [shape = 's32[]', space=sflag, size = 0x4, offset = 0, fixed_abs, tag = 'sflag constant byte address 0x0 - dummy sync flag']
  #allocation26 [shape = 's32[]', space=sflag, size = 0x4, offset = 0, fixed_abs, tag = 'sflag constant byte address 0x0 - dummy sync flag']
  #allocation27 [shape = 's32[]', space=sflag, size = 0x4, offset = 0, fixed_abs, tag = 'sflag constant byte address 0x0 - dummy sync flag']
  %s0 = inlined_call_operand.vmem [shape: s32[16], index: 0, kind: input, shape index: {}]
  %s1 = inlined_call_operand.vmem [shape: s32[16,2], index: 1, kind: input, shape index: {}]
  %s2 = inlined_call_operand.hbm [shape: f32[40,128], index: 2, kind: input, shape index: {}]
  %s3 = inlined_call_operand.hbm [shape: f32[64,128], index: 3, kind: input, shape index: {}]
  %s4 = inlined_call_operand.hbm [shape: f32[16,128], index: 4, kind: output, shape index: {}]
  %s5 = sld [smem:[#allocation0]]
  $region61: #{tpu_custom_call.1} parent=0
    _
  %s7 = ssub.s32 1, %s5
  %s8 = scalar_select 0, %s7, %s5
  %s9 = sshll.u32 %s0, 4
  %s10 = int_to_ptr.vmem [resolvable:$true] %s9
  %12 = dma.vmem_to_smem %s10, 16, [#allocation5], [#allocation4]
  %13 = dma.done [#allocation4], 16
  %14 = sfence
  $region1: #{tpu_custom_call.1} parent=0
    #allocation6 [shape = 'u8[20480]{0}', space=vmem, size = 0x5000, scoped, tag = 'input window, operand 2, single buffered']
    #allocation7 [shape = 's32[1]{0}', space=sflag, size = 0x4, scoped, tag = 'scoped memory for tpu_custom_call.1']
    #allocation8 [shape = 's32[1]{0}', space=sflag, size = 0x4, scoped, tag = 'scoped memory for tpu_custom_call.1']
    #allocation9 [shape = 'u8[8192]{0}', space=vmem, size = 0x2000, scoped, tag = 'output window, operand 0, single buffered']
    %15 = vsyncpa [#allocation7], 0
    %16 = vsyncpa [#allocation8], 0
    // Predicated region
    $region2: #{tpu_custom_call.1} parent=1 // pred_check
      _
    $region3: #{tpu_custom_call.1} parent=1 // pred_check_branch
      %18 = sbr.rel (0) target = $region5
    $region4: #{tpu_custom_call.1} parent=1 // pred_region
      _
    $region5: #{tpu_custom_call.1} parent=1 // pred_fallthru
      _
    // Predicated region
    $region6: #{tpu_custom_call.1} parent=1 // pred_check
      _
    $region7: #{tpu_custom_call.1} parent=1 // pred_check_branch
      %20 = sbr.rel (0) target = $region9
    $region8: #{tpu_custom_call.1} parent=1 // pred_region
      %s22 = ssub.s32 640, 640
      %23 = vsyncadd [#allocation7], %s22
      %s24 = sshll.u32 [#allocation6], 4
      %s25 = int_to_ptr.vmem [resolvable:$true] %s24
      %30 = dma.hbm_to_vmem [thread:$0]  %s2, 640, %s25, [#allocation7], 128, 128, 8
    $region9: #{tpu_custom_call.1} parent=1 // pred_fallthru
      _
    // Predicated region
    $region10: #{tpu_custom_call.1} parent=1 // pred_check
      _
    $region11: #{tpu_custom_call.1} parent=1 // pred_check_branch
      %32 = sbr.rel (0) target = $region13
    $region12: #{tpu_custom_call.1} parent=1 // pred_region
      %33 = dma.done [#allocation7], 640
    $region13: #{tpu_custom_call.1} parent=1 // pred_fallthru
      _
    %s34 = smul.u32 0, 16
    loop: start=0, step=1, limit=2
    $region14: #{tpu_custom_call.1} parent=1 // loop_pre_header
      _
    $region15: #{tpu_custom_call.1} parent=1 // loop_header
      %s36 = sphi 0, %s40
      %p37 = scmp.ge.s32.totalorder %s36, 2
    $region16: #{tpu_custom_call.1} parent=1 // loop_header_branch
      %39 = sbr.rel (%p37) target = $region20
    $region17: #{tpu_custom_call.1} parent=1 // loop_body
      %s41 = smul.u32 %s36, 8
      %s42 = sadd.s32 %s34, %s41
      %s43 = sld [smem:[#allocation5 + %s42]]
      %s44 = smul.addr %s43, 16
      %s45 = scalar_lea.hbm %s3, %s44
      %s46 = scalar_lea.vmem [#allocation2], %s41
      // Predicated region
      $region21: #{tpu_custom_call.1} parent=17 // pred_check
        _
      $region22: #{tpu_custom_call.1} parent=17 // pred_check_branch
        %48 = sbr.rel target = $region24
      $region23: #{tpu_custom_call.1} parent=17 // pred_region
        %49 = sst [smem:[#allocation12]] [#allocation11]
        %50 = sst [smem:[#allocation13]] [#allocation10]
      $region24: #{tpu_custom_call.1} parent=17 // pred_fallthru
        _
      %52 = shalt.err (0)
      %s54 = sshll.u32 %s46, 4
      %s55 = int_to_ptr.vmem [resolvable:$true] %s54
      %57 = dma.hbm_to_vmem [thread:$0]  %s45, 16, %s55, [#allocation3]
      %s58 = sadd.s32 %s41, 1
      %s59 = sadd.s32 %s34, %s58
      %s60 = sld [smem:[#allocation5 + %s59]]
      %s61 = smul.addr %s60, 16
      %s62 = scalar_lea.hbm %s3, %s61
      %s63 = scalar_lea.vmem [#allocation2], %s58
      // Predicated region
      $region25: #{tpu_custom_call.1} parent=17 // pred_check
        _
      $region26: #{tpu_custom_call.1} parent=17 // pred_check_branch
        %65 = sbr.rel target = $region28
      $region27: #{tpu_custom_call.1} parent=17 // pred_region
        %66 = sst [smem:[#allocation12]] [#allocation15]
        %67 = sst [smem:[#allocation13]] [#allocation14]
      $region28: #{tpu_custom_call.1} parent=17 // pred_fallthru
        _
      %69 = shalt.err (0)
      %s71 = sshll.u32 %s63, 4
      %s72 = int_to_ptr.vmem [resolvable:$true] %s71
      %74 = dma.hbm_to_vmem [thread:$0]  %s62, 16, %s72, [#allocation3]
      %s75 = sadd.s32 %s41, 2
      %s76 = sadd.s32 %s34, %s75
      %s77 = sld [smem:[#allocation5 + %s76]]
      %s78 = smul.addr %s77, 16
      %s79 = scalar_lea.hbm %s3, %s78
      %s80 = scalar_lea.vmem [#allocation2], %s75
      // Predicated region
      $region29: #{tpu_custom_call.1} parent=17 // pred_check
        _
      $region30: #{tpu_custom_call.1} parent=17 // pred_check_branch
        %82 = sbr.rel target = $region32
      $region31: #{tpu_custom_call.1} parent=17 // pred_region
        %83 = sst [smem:[#allocation12]] [#allocation17]
        %84 = sst [smem:[#allocation13]] [#allocation16]
      $region32: #{tpu_custom_call.1} parent=17 // pred_fallthru
        _
      %86 = shalt.err (0)
      %s88 = sshll.u32 %s80, 4
      %s89 = int_to_ptr.vmem [resolvable:$true] %s88
      %91 = dma.hbm_to_vmem [thread:$0]  %s79, 16, %s89, [#allocation3]
      %s92 = sadd.s32 %s41, 3
      %s93 = sadd.s32 %s34, %s92
      %s94 = sld [smem:[#allocation5 + %s93]]
      %s95 = smul.addr %s94, 16
      %s96 = scalar_lea.hbm %s3, %s95
      %s97 = scalar_lea.vmem [#allocation2], %s92
      // Predicated region
      $region33: #{tpu_custom_call.1} parent=17 // pred_check
        _
      $region34: #{tpu_custom_call.1} parent=17 // pred_check_branch
        %99 = sbr.rel target = $region36
      $region35: #{tpu_custom_call.1} parent=17 // pred_region
        %100 = sst [smem:[#allocation12]] [#allocation19]
        %101 = sst [smem:[#allocation13]] [#allocation18]
      $region36: #{tpu_custom_call.1} parent=17 // pred_fallthru
        _
      %103 = shalt.err (0)
      %s105 = sshll.u32 %s97, 4
      %s106 = int_to_ptr.vmem [resolvable:$true] %s105
      %108 = dma.hbm_to_vmem [thread:$0]  %s96, 16, %s106, [#allocation3]
      %s109 = sadd.s32 %s41, 4
      %s110 = sadd.s32 %s34, %s109
      %s111 = sld [smem:[#allocation5 + %s110]]
      %s112 = smul.addr %s111, 16
      %s113 = scalar_lea.hbm %s3, %s112
      %s114 = scalar_lea.vmem [#allocation2], %s109
      // Predicated region
      $region37: #{tpu_custom_call.1} parent=17 // pred_check
        _
      $region38: #{tpu_custom_call.1} parent=17 // pred_check_branch
        %116 = sbr.rel target = $region40
      $region39: #{tpu_custom_call.1} parent=17 // pred_region
        %117 = sst [smem:[#allocation12]] [#allocation21]
        %118 = sst [smem:[#allocation13]] [#allocation20]
      $region40: #{tpu_custom_call.1} parent=17 // pred_fallthru
        _
      %120 = shalt.err (0)
      %s122 = sshll.u32 %s114, 4
      %s123 = int_to_ptr.vmem [resolvable:$true] %s122
      %125 = dma.hbm_to_vmem [thread:$0]  %s113, 16, %s123, [#allocation3]
      %s126 = sadd.s32 %s41, 5
      %s127 = sadd.s32 %s34, %s126
      %s128 = sld [smem:[#allocation5 + %s127]]
      %s129 = smul.addr %s128, 16
      %s130 = scalar_lea.hbm %s3, %s129
      %s131 = scalar_lea.vmem [#allocation2], %s126
      // Predicated region
      $region41: #{tpu_custom_call.1} parent=17 // pred_check
        _
      $region42: #{tpu_custom_call.1} parent=17 // pred_check_branch
        %133 = sbr.rel target = $region44
      $region43: #{tpu_custom_call.1} parent=17 // pred_region
        %134 = sst [smem:[#allocation12]] [#allocation23]
        %135 = sst [smem:[#allocation13]] [#allocation22]
      $region44: #{tpu_custom_call.1} parent=17 // pred_fallthru
        _
      %137 = shalt.err (0)
      %s139 = sshll.u32 %s131, 4
      %s140 = int_to_ptr.vmem [resolvable:$true] %s139
      %142 = dma.hbm_to_vmem [thread:$0]  %s130, 16, %s140, [#allocation3]
      %s143 = sadd.s32 %s41, 6
      %s144 = sadd.s32 %s34, %s143
      %s145 = sld [smem:[#allocation5 + %s144]]
      %s146 = smul.addr %s145, 16
      %s147 = scalar_lea.hbm %s3, %s146
      %s148 = scalar_lea.vmem [#allocation2], %s143
      // Predicated region
      $region45: #{tpu_custom_call.1} parent=17 // pred_check
        _
      $region46: #{tpu_custom_call.1} parent=17 // pred_check_branch
        %150 = sbr.rel target = $region48
      $region47: #{tpu_custom_call.1} parent=17 // pred_region
        %151 = sst [smem:[#allocation12]] [#allocation25]
        %152 = sst [smem:[#allocation13]] [#allocation24]
      $region48: #{tpu_custom_call.1} parent=17 // pred_fallthru
        _
      %154 = shalt.err (0)
      %s156 = sshll.u32 %s148, 4
      %s157 = int_to_ptr.vmem [resolvable:$true] %s156
      %159 = dma.hbm_to_vmem [thread:$0]  %s147, 16, %s157, [#allocation3]
      %s160 = sadd.s32 %s41, 7
      %s161 = sadd.s32 %s34, %s160
      %s162 = sld [smem:[#allocation5 + %s161]]
      %s163 = smul.addr %s162, 16
      %s164 = scalar_lea.hbm %s3, %s163
      %s165 = scalar_lea.vmem [#allocation2], %s160
      // Predicated region
      $region49: #{tpu_custom_call.1} parent=17 // pred_check
        _
      $region50: #{tpu_custom_call.1} parent=17 // pred_check_branch
        %167 = sbr.rel target = $region52
      $region51: #{tpu_custom_call.1} parent=17 // pred_region
        %168 = sst [smem:[#allocation12]] [#allocation27]
        %169 = sst [smem:[#allocation13]] [#allocation26]
      $region52: #{tpu_custom_call.1} parent=17 // pred_fallthru
        _
      %171 = shalt.err (0)
      %s173 = sshll.u32 %s165, 4
      %s174 = int_to_ptr.vmem [resolvable:$true] %s173
      %176 = dma.hbm_to_vmem [thread:$0]  %s164, 16, %s174, [#allocation3]
    $region18: #{tpu_custom_call.1} parent=1 // loop_footer
      %s40 = sadd.s32 1, %s36
    $region19: #{tpu_custom_call.1} parent=1 // loop_footer_branch
      %35 = sbr.rel target = $region15
    $region20: #{tpu_custom_call.1} parent=1 // loop_exit
      _
    %v177 = vld [vmem:[%s1] sm:$0xff]
    %v178 = vld [vmem:[%s1 + $0x8] sm:$0xff]
    %v179 = vlaneseq
    %v180 = vand.u32 %v179, 127
    %181 = vset.pattern.permute.xlu0 0
    %182 = vperm.xlu0 %181, %v177
    %v183 = vpop.permute.xlu0 %182
    %184 = vset.pattern.permute.xlu0 0
    %185 = vperm.xlu0 %184, %v178
    %v186 = vpop.permute.xlu0 %185
    %vm187 = vcmp.eq.s32.totalorder %v183, %v180
    %vm188 = vcmp.eq.s32.totalorder %v186, %v180
    %189 = vset.pattern.permute.xlu0 1
    %190 = vperm.xlu0 %189, %v177
    %v191 = vpop.permute.xlu0 %190
    %192 = vset.pattern.permute.xlu0 1
    %193 = vperm.xlu0 %192, %v178
    %v194 = vpop.permute.xlu0 %193
    %vm195 = vcmp.eq.s32.totalorder %v191, %v180
    %vm196 = vcmp.eq.s32.totalorder %v194, %v180
    %vm197 = vmor %vm187, %vm195
    %vm198 = vmor %vm188, %vm196
    %v199 = vsel %vm197, 1, 0
    %v200 = vsel %vm198, 1, 0
    %v201 = vcvt.s32.f32 %v199
    %v202 = vcvt.s32.f32 %v200
    %v203 = vld [vmem:[#allocation6] sm:$0xff]
    %v204 = vld [vmem:[#allocation6 + $0x8] sm:$0xff]
    %v205 = vld [vmem:[#allocation6 + $0x10] sm:$0xff]
    %v206 = vld [vmem:[#allocation6 + $0x18] sm:$0xff]
    %v207 = vld [vmem:[#allocation6 + $0x20] sm:$0xff]
    %vm208 = vcmask 326656
    %v210 = vsel %vm208, %v201, 0
    %v213 = vsel %vm208, %v202, 0
    %215 = vmatprep.subr.mxu0 0.0
    %v216 = vand.u32 %v203, 4294901760
    %217 = vmatpush1.msra.mxu0 %v216
    %218 = vmatprep.subr.mxu0 0.0
    %v219 = vand.u32 %v204, 4294901760
    %220 = vmatpush1.msra.mxu0 %v219
    %221 = vmatprep.subr.mxu0 0.0
    %v222 = vand.u32 %v205, 4294901760
    %223 = vmatpush1.msra.mxu0 %v222
    %224 = vmatprep.subr.mxu0 0.0
    %v225 = vand.u32 %v206, 4294901760
    %226 = vmatpush1.msra.mxu0 %v225
    %227 = vmatprep.subr.mxu0 0.0
    %v228 = vand.u32 %v207, 4294901760
    %229 = vmatpush1.msra.mxu0 %v228
    %230 = vmatprep.subr.mxu0 0.0
    %231 = vmatpush1.msra.mxu0 0.0
    %232 = vmatprep.subr.mxu0 0.0
    %233 = vmatpush1.msra.mxu0 0.0
    %234 = vmatprep.subr.mxu0 0.0
    %235 = vmatpush1.msra.mxu0 0.0
    %236 = vmatprep.subr.mxu0 0.0
    %237 = vmatpush1.msra.mxu0 0.0
    %238 = vmatprep.subr.mxu0 0.0
    %239 = vmatpush1.msra.mxu0 0.0
    %240 = vmatprep.subr.mxu0 0.0
    %241 = vmatpush1.msra.mxu0 0.0
    %242 = vmatprep.subr.mxu0 0.0
    %243 = vmatpush1.msra.mxu0 0.0
    %244 = vmatprep.subr.mxu0 0.0
    %245 = vmatpush1.msra.mxu0 0.0
    %246 = vmatprep.subr.mxu0 0.0
    %247 = vmatpush1.msra.mxu0 0.0
    %248 = vmatprep.subr.mxu0 0.0
    %249 = vmatpush1.msra.mxu0 0.0
    %250 = vmatprep.subr.mxu0 0.0
    %251 = vmatpush1.msra.mxu0 0.0
    %252 = vmatprep.subr.mxu0 0.0
    %253 = vmatpush1.msra.mxu0 0.0
    %254 = vmatprep.subr.mxu0 0.0
    %255 = vmatpush1.msra.mxu0 0.0
    %256 = vmatprep.subr.mxu0 0.0
    %257 = vmatpush1.msra.mxu0 0.0
    %258 = vmatprep.subr.mxu0 0.0
    %259 = vmatpush1.msra.mxu0 0.0
    %260 = vmatprep.subr.mxu0 0.0
    %261 = vmatpush1.msra.mxu0 0.0
    %262 = vmatprep.subr.mxu0 0.0
    %263 = vmatpush1.msra.mxu0 0.0
    %264 = vmatprep.subr.mxu0 0.0
    %265 = vmatpush1.msra.mxu0 0.0
    %266 = vmatprep.subr.mxu0 0.0
    %267 = vmatpush1.msra.mxu0 0.0
    %268 = vmatprep.subr.mxu0 0.0
    %269 = vmatpush1.msra.mxu0 0.0
    %270 = vmatprep.subr.mxu0 0.0
    %271 = vmatpush1.msra.mxu0 0.0
    %272 = vmatprep.subr.mxu0 0.0
    %273 = vmatpush1.msra.mxu0 0.0
    %274 = vmatprep.subr.mxu0 0.0
    %275 = vmatpush1.msra.mxu0 0.0
    %276 = vmatprep.subr.mxu0 0.0
    %277 = vmatpush1.msra.mxu0 0.0
    %278 = vmatprep.subr.mxu0 0.0
    %279 = vmatpush1.msra.mxu0 0.0
    %280 = vmatprep.subr.mxu0 0.0
    %281 = vmatpush1.msra.mxu0 0.0
    %282 = vmatprep.subr.mxu0 0.0
    %283 = vmatpush1.msra.mxu0 0.0
    %284 = vmatprep.mubr.f32.mxu0 0.0
    %v285 = vand.u32 %v210, 4294901760
    %v286 = vsub.f32 %v210, %v285
    %v287 = vand.u32 %v286, 4294901760
    %v288 = vsub.f32 %v286, %v287
    %v289 = vand.u32 %v288, 4294901760
    %290 = vmatmul.mubr.f32.gmra.mrb[0].mxu0 %v289
    %v291 = vpop.f32.mrb[0].mxu0
    %v292 = vadd.f32 0.0, %v291
    %v293 = vpop.f32.mrb[0].mxu0
    %294 = vmatprep.mubr.f32.mxu0 0.0
    %v295 = vand.u32 %v213, 4294901760
    %v296 = vsub.f32 %v213, %v295
    %v297 = vand.u32 %v296, 4294901760
    %v298 = vsub.f32 %v296, %v297
    %v299 = vand.u32 %v298, 4294901760
    %300 = vmatmul.mubr.f32.gmra.mrb[0].mxu0 %v299
    %v301 = vpop.f32.mrb[0].mxu0
    %v302 = vadd.f32 0.0, %v301
    %v303 = vpop.f32.mrb[0].mxu0
    %304 = vdwg.mxu0
    %305 = vmatprep.subr.mxu0 0.0
    %v306 = vand.u32 %v203, 4294901760
    %v307 = vsub.f32 %v203, %v306
    %v308 = vand.u32 %v307, 4294901760
    %v309 = vsub.f32 %v307, %v308
    %v310 = vand.u32 %v309, 4294901760
    %311 = vmatpush1.msra.mxu0 %v310
    %312 = vmatprep.subr.mxu0 0.0
    %v313 = vand.u32 %v204, 4294901760
    %v314 = vsub.f32 %v204, %v313
    %v315 = vand.u32 %v314, 4294901760
    %v316 = vsub.f32 %v314, %v315
    %v317 = vand.u32 %v316, 4294901760
    %318 = vmatpush1.msra.mxu0 %v317
    %319 = vmatprep.subr.mxu0 0.0
    %v320 = vand.u32 %v205, 4294901760
    %v321 = vsub.f32 %v205, %v320
    %v322 = vand.u32 %v321, 4294901760
    %v323 = vsub.f32 %v321, %v322
    %v324 = vand.u32 %v323, 4294901760
    %325 = vmatpush1.msra.mxu0 %v324
    %326 = vmatprep.subr.mxu0 0.0
    %v327 = vand.u32 %v206, 4294901760
    %v328 = vsub.f32 %v206, %v327
    %v329 = vand.u32 %v328, 4294901760
    %v330 = vsub.f32 %v328, %v329
    %v331 = vand.u32 %v330, 4294901760
    %332 = vmatpush1.msra.mxu0 %v331
    %333 = vmatprep.subr.mxu0 0.0
    %v334 = vand.u32 %v207, 4294901760
    %v335 = vsub.f32 %v207, %v334
    %v336 = vand.u32 %v335, 4294901760
    %v337 = vsub.f32 %v335, %v336
    %v338 = vand.u32 %v337, 4294901760
    %339 = vmatpush1.msra.mxu0 %v338
    %340 = vmatprep.subr.mxu0 0.0
    %341 = vmatpush1.msra.mxu0 0.0
    %342 = vmatprep.subr.mxu0 0.0
    %343 = vmatpush1.msra.mxu0 0.0
    %344 = vmatprep.subr.mxu0 0.0
    %345 = vmatpush1.msra.mxu0 0.0
    %346 = vmatprep.subr.mxu0 0.0
    %347 = vmatpush1.msra.mxu0 0.0
    %348 = vmatprep.subr.mxu0 0.0
    %349 = vmatpush1.msra.mxu0 0.0
    %350 = vmatprep.subr.mxu0 0.0
    %351 = vmatpush1.msra.mxu0 0.0
    %352 = vmatprep.subr.mxu0 0.0
    %353 = vmatpush1.msra.mxu0 0.0
    %354 = vmatprep.subr.mxu0 0.0
    %355 = vmatpush1.msra.mxu0 0.0
    %356 = vmatprep.subr.mxu0 0.0
    %357 = vmatpush1.msra.mxu0 0.0
    %358 = vmatprep.subr.mxu0 0.0
    %359 = vmatpush1.msra.mxu0 0.0
    %360 = vmatprep.subr.mxu0 0.0
    %361 = vmatpush1.msra.mxu0 0.0
    %362 = vmatprep.subr.mxu0 0.0
    %363 = vmatpush1.msra.mxu0 0.0
    %364 = vmatprep.subr.mxu0 0.0
    %365 = vmatpush1.msra.mxu0 0.0
    %366 = vmatprep.subr.mxu0 0.0
    %367 = vmatpush1.msra.mxu0 0.0
    %368 = vmatprep.subr.mxu0 0.0
    %369 = vmatpush1.msra.mxu0 0.0
    %370 = vmatprep.subr.mxu0 0.0
    %371 = vmatpush1.msra.mxu0 0.0
    %372 = vmatprep.subr.mxu0 0.0
    %373 = vmatpush1.msra.mxu0 0.0
    %374 = vmatprep.subr.mxu0 0.0
    %375 = vmatpush1.msra.mxu0 0.0
    %376 = vmatprep.subr.mxu0 0.0
    %377 = vmatpush1.msra.mxu0 0.0
    %378 = vmatprep.subr.mxu0 0.0
    %379 = vmatpush1.msra.mxu0 0.0
    %380 = vmatprep.subr.mxu0 0.0
    %381 = vmatpush1.msra.mxu0 0.0
    %382 = vmatprep.subr.mxu0 0.0
    %383 = vmatpush1.msra.mxu0 0.0
    %384 = vmatprep.subr.mxu0 0.0
    %385 = vmatpush1.msra.mxu0 0.0
    %386 = vmatprep.subr.mxu0 0.0
    %387 = vmatpush1.msra.mxu0 0.0
    %388 = vmatprep.subr.mxu0 0.0
    %389 = vmatpush1.msra.mxu0 0.0
    %390 = vmatprep.subr.mxu0 0.0
    %391 = vmatpush1.msra.mxu0 0.0
    %392 = vmatprep.subr.mxu0 0.0
    %393 = vmatpush1.msra.mxu0 0.0
    %394 = vmatprep.mubr.f32.mxu0 0.0
    %v395 = vand.u32 %v210, 4294901760
    %396 = vmatmul.mubr.f32.gmra.mrb[0].mxu0 %v395
    %v397 = vpop.f32.mrb[0].mxu0
    %v398 = vadd.f32 %v292, %v397
    %v399 = vpop.f32.mrb[0].mxu0
    %400 = vmatprep.mubr.f32.mxu0 0.0
    %v401 = vand.u32 %v213, 4294901760
    %402 = vmatmul.mubr.f32.gmra.mrb[0].mxu0 %v401
    %v403 = vpop.f32.mrb[0].mxu0
    %v404 = vadd.f32 %v302, %v403
    %v405 = vpop.f32.mrb[0].mxu0
    %406 = vdwg.mxu0
    %407 = vmatprep.subr.mxu0 0.0
    %v408 = vand.u32 %v203, 4294901760
    %v409 = vsub.f32 %v203, %v408
    %410 = vmatpush1.msra.mxu0 %v409
    %411 = vmatprep.subr.mxu0 0.0
    %v412 = vand.u32 %v204, 4294901760
    %v413 = vsub.f32 %v204, %v412
    %414 = vmatpush1.msra.mxu0 %v413
    %415 = vmatprep.subr.mxu0 0.0
    %v416 = vand.u32 %v205, 4294901760
    %v417 = vsub.f32 %v205, %v416
    %418 = vmatpush1.msra.mxu0 %v417
    %419 = vmatprep.subr.mxu0 0.0
    %v420 = vand.u32 %v206, 4294901760
    %v421 = vsub.f32 %v206, %v420
    %422 = vmatpush1.msra.mxu0 %v421
    %423 = vmatprep.subr.mxu0 0.0
    %v424 = vand.u32 %v207, 4294901760
    %v425 = vsub.f32 %v207, %v424
    %426 = vmatpush1.msra.mxu0 %v425
    %427 = vmatprep.subr.mxu0 0.0
    %428 = vmatpush1.msra.mxu0 0.0
    %429 = vmatprep.subr.mxu0 0.0
    %430 = vmatpush1.msra.mxu0 0.0
    %431 = vmatprep.subr.mxu0 0.0
    %432 = vmatpush1.msra.mxu0 0.0
    %433 = vmatprep.subr.mxu0 0.0
    %434 = vmatpush1.msra.mxu0 0.0
    %435 = vmatprep.subr.mxu0 0.0
    %436 = vmatpush1.msra.mxu0 0.0
    %437 = vmatprep.subr.mxu0 0.0
    %438 = vmatpush1.msra.mxu0 0.0
    %439 = vmatprep.subr.mxu0 0.0
    %440 = vmatpush1.msra.mxu0 0.0
    %441 = vmatprep.subr.mxu0 0.0
    %442 = vmatpush1.msra.mxu0 0.0
    %443 = vmatprep.subr.mxu0 0.0
    %444 = vmatpush1.msra.mxu0 0.0
    %445 = vmatprep.subr.mxu0 0.0
    %446 = vmatpush1.msra.mxu0 0.0
    %447 = vmatprep.subr.mxu0 0.0
    %448 = vmatpush1.msra.mxu0 0.0
    %449 = vmatprep.subr.mxu0 0.0
    %450 = vmatpush1.msra.mxu0 0.0
    %451 = vmatprep.subr.mxu0 0.0
    %452 = vmatpush1.msra.mxu0 0.0
    %453 = vmatprep.subr.mxu0 0.0
    %454 = vmatpush1.msra.mxu0 0.0
    %455 = vmatprep.subr.mxu0 0.0
    %456 = vmatpush1.msra.mxu0 0.0
    %457 = vmatprep.subr.mxu0 0.0
    %458 = vmatpush1.msra.mxu0 0.0
    %459 = vmatprep.subr.mxu0 0.0
    %460 = vmatpush1.msra.mxu0 0.0
    %461 = vmatprep.subr.mxu0 0.0
    %462 = vmatpush1.msra.mxu0 0.0
    %463 = vmatprep.subr.mxu0 0.0
    %464 = vmatpush1.msra.mxu0 0.0
    %465 = vmatprep.subr.mxu0 0.0
    %466 = vmatpush1.msra.mxu0 0.0
    %467 = vmatprep.subr.mxu0 0.0
    %468 = vmatpush1.msra.mxu0 0.0
    %469 = vmatprep.subr.mxu0 0.0
    %470 = vmatpush1.msra.mxu0 0.0
    %471 = vmatprep.subr.mxu0 0.0
    %472 = vmatpush1.msra.mxu0 0.0
    %473 = vmatprep.subr.mxu0 0.0
    %474 = vmatpush1.msra.mxu0 0.0
    %475 = vmatprep.subr.mxu0 0.0
    %476 = vmatpush1.msra.mxu0 0.0
    %477 = vmatprep.subr.mxu0 0.0
    %478 = vmatpush1.msra.mxu0 0.0
    %479 = vmatprep.subr.mxu0 0.0
    %480 = vmatpush1.msra.mxu0 0.0
    %481 = vmatprep.mubr.f32.mxu0 0.0
    %v482 = vand.u32 %v210, 4294901760
    %v483 = vsub.f32 %v210, %v482
    %484 = vmatmul.mubr.f32.gmra.mrb[0].mxu0 %v483
    %v485 = vpop.f32.mrb[0].mxu0
    %v486 = vadd.f32 %v398, %v485
    %v487 = vpop.f32.mrb[0].mxu0
    %488 = vmatprep.mubr.f32.mxu0 0.0
    %v489 = vand.u32 %v213, 4294901760
    %v490 = vsub.f32 %v213, %v489
    %491 = vmatmul.mubr.f32.gmra.mrb[0].mxu0 %v490
    %v492 = vpop.f32.mrb[0].mxu0
    %v493 = vadd.f32 %v404, %v492
    %v494 = vpop.f32.mrb[0].mxu0
    %495 = vdwg.mxu0
    %496 = vmatprep.subr.mxu0 0.0
    %v497 = vand.u32 %v203, 4294901760
    %498 = vmatpush1.msra.mxu0 %v497
    %499 = vmatprep.subr.mxu0 0.0
    %v500 = vand.u32 %v204, 4294901760
    %501 = vmatpush1.msra.mxu0 %v500
    %502 = vmatprep.subr.mxu0 0.0
    %v503 = vand.u32 %v205, 4294901760
    %504 = vmatpush1.msra.mxu0 %v503
    %505 = vmatprep.subr.mxu0 0.0
    %v506 = vand.u32 %v206, 4294901760
    %507 = vmatpush1.msra.mxu0 %v506
    %508 = vmatprep.subr.mxu0 0.0
    %v509 = vand.u32 %v207, 4294901760
    %510 = vmatpush1.msra.mxu0 %v509
    %511 = vmatprep.subr.mxu0 0.0
    %512 = vmatpush1.msra.mxu0 0.0
    %513 = vmatprep.subr.mxu0 0.0
    %514 = vmatpush1.msra.mxu0 0.0
    %515 = vmatprep.subr.mxu0 0.0
    %516 = vmatpush1.msra.mxu0 0.0
    %517 = vmatprep.subr.mxu0 0.0
    %518 = vmatpush1.msra.mxu0 0.0
    %519 = vmatprep.subr.mxu0 0.0
    %520 = vmatpush1.msra.mxu0 0.0
    %521 = vmatprep.subr.mxu0 0.0
    %522 = vmatpush1.msra.mxu0 0.0
    %523 = vmatprep.subr.mxu0 0.0
    %524 = vmatpush1.msra.mxu0 0.0
    %525 = vmatprep.subr.mxu0 0.0
    %526 = vmatpush1.msra.mxu0 0.0
    %527 = vmatprep.subr.mxu0 0.0
    %528 = vmatpush1.msra.mxu0 0.0
    %529 = vmatprep.subr.mxu0 0.0
    %530 = vmatpush1.msra.mxu0 0.0
    %531 = vmatprep.subr.mxu0 0.0
    %532 = vmatpush1.msra.mxu0 0.0
    %533 = vmatprep.subr.mxu0 0.0
    %534 = vmatpush1.msra.mxu0 0.0
    %535 = vmatprep.subr.mxu0 0.0
    %536 = vmatpush1.msra.mxu0 0.0
    %537 = vmatprep.subr.mxu0 0.0
    %538 = vmatpush1.msra.mxu0 0.0
    %539 = vmatprep.subr.mxu0 0.0
    %540 = vmatpush1.msra.mxu0 0.0
    %541 = vmatprep.subr.mxu0 0.0
    %542 = vmatpush1.msra.mxu0 0.0
    %543 = vmatprep.subr.mxu0 0.0
    %544 = vmatpush1.msra.mxu0 0.0
    %545 = vmatprep.subr.mxu0 0.0
    %546 = vmatpush1.msra.mxu0 0.0
    %547 = vmatprep.subr.mxu0 0.0
    %548 = vmatpush1.msra.mxu0 0.0
    %549 = vmatprep.subr.mxu0 0.0
    %550 = vmatpush1.msra.mxu0 0.0
    %551 = vmatprep.subr.mxu0 0.0
    %552 = vmatpush1.msra.mxu0 0.0
    %553 = vmatprep.subr.mxu0 0.0
    %554 = vmatpush1.msra.mxu0 0.0
    %555 = vmatprep.subr.mxu0 0.0
    %556 = vmatpush1.msra.mxu0 0.0
    %557 = vmatprep.subr.mxu0 0.0
    %558 = vmatpush1.msra.mxu0 0.0
    %559 = vmatprep.subr.mxu0 0.0
    %560 = vmatpush1.msra.mxu0 0.0
    %561 = vmatprep.subr.mxu0 0.0
    %562 = vmatpush1.msra.mxu0 0.0
    %563 = vmatprep.subr.mxu0 0.0
    %564 = vmatpush1.msra.mxu0 0.0
    %565 = vmatprep.mubr.f32.mxu0 0.0
    %v566 = vand.u32 %v210, 4294901760
    %v567 = vsub.f32 %v210, %v566
    %v568 = vand.u32 %v567, 4294901760
    %569 = vmatmul.mubr.f32.gmra.mrb[0].mxu0 %v568
    %v570 = vpop.f32.mrb[0].mxu0
    %v571 = vadd.f32 %v486, %v570
    %v572 = vpop.f32.mrb[0].mxu0
    %573 = vmatprep.mubr.f32.mxu0 0.0
    %v574 = vand.u32 %v213, 4294901760
    %v575 = vsub.f32 %v213, %v574
    %v576 = vand.u32 %v575, 4294901760
    %577 = vmatmul.mubr.f32.gmra.mrb[0].mxu0 %v576
    %v578 = vpop.f32.mrb[0].mxu0
    %v579 = vadd.f32 %v493, %v578
    %v580 = vpop.f32.mrb[0].mxu0
    %581 = vdwg.mxu0
    %582 = vmatprep.subr.mxu0 0.0
    %v583 = vand.u32 %v203, 4294901760
    %v584 = vsub.f32 %v203, %v583
    %v585 = vand.u32 %v584, 4294901760
    %586 = vmatpush1.msra.mxu0 %v585
    %587 = vmatprep.subr.mxu0 0.0
    %v588 = vand.u32 %v204, 4294901760
    %v589 = vsub.f32 %v204, %v588
    %v590 = vand.u32 %v589, 4294901760
    %591 = vmatpush1.msra.mxu0 %v590
    %592 = vmatprep.subr.mxu0 0.0
    %v593 = vand.u32 %v205, 4294901760
    %v594 = vsub.f32 %v205, %v593
    %v595 = vand.u32 %v594, 4294901760
    %596 = vmatpush1.msra.mxu0 %v595
    %597 = vmatprep.subr.mxu0 0.0
    %v598 = vand.u32 %v206, 4294901760
    %v599 = vsub.f32 %v206, %v598
    %v600 = vand.u32 %v599, 4294901760
    %601 = vmatpush1.msra.mxu0 %v600
    %602 = vmatprep.subr.mxu0 0.0
    %v603 = vand.u32 %v207, 4294901760
    %v604 = vsub.f32 %v207, %v603
    %v605 = vand.u32 %v604, 4294901760
    %606 = vmatpush1.msra.mxu0 %v605
    %607 = vmatprep.subr.mxu0 0.0
    %608 = vmatpush1.msra.mxu0 0.0
    %609 = vmatprep.subr.mxu0 0.0
    %610 = vmatpush1.msra.mxu0 0.0
    %611 = vmatprep.subr.mxu0 0.0
    %612 = vmatpush1.msra.mxu0 0.0
    %613 = vmatprep.subr.mxu0 0.0
    %614 = vmatpush1.msra.mxu0 0.0
    %615 = vmatprep.subr.mxu0 0.0
    %616 = vmatpush1.msra.mxu0 0.0
    %617 = vmatprep.subr.mxu0 0.0
    %618 = vmatpush1.msra.mxu0 0.0
    %619 = vmatprep.subr.mxu0 0.0
    %620 = vmatpush1.msra.mxu0 0.0
    %621 = vmatprep.subr.mxu0 0.0
    %622 = vmatpush1.msra.mxu0 0.0
    %623 = vmatprep.subr.mxu0 0.0
    %624 = vmatpush1.msra.mxu0 0.0
    %625 = vmatprep.subr.mxu0 0.0
    %626 = vmatpush1.msra.mxu0 0.0
    %627 = vmatprep.subr.mxu0 0.0
    %628 = vmatpush1.msra.mxu0 0.0
    %629 = vmatprep.subr.mxu0 0.0
    %630 = vmatpush1.msra.mxu0 0.0
    %631 = vmatprep.subr.mxu0 0.0
    %632 = vmatpush1.msra.mxu0 0.0
    %633 = vmatprep.subr.mxu0 0.0
    %634 = vmatpush1.msra.mxu0 0.0
    %635 = vmatprep.subr.mxu0 0.0
    %636 = vmatpush1.msra.mxu0 0.0
    %637 = vmatprep.subr.mxu0 0.0
    %638 = vmatpush1.msra.mxu0 0.0
    %639 = vmatprep.subr.mxu0 0.0
    %640 = vmatpush1.msra.mxu0 0.0
    %641 = vmatprep.subr.mxu0 0.0
    %642 = vmatpush1.msra.mxu0 0.0
    %643 = vmatprep.subr.mxu0 0.0
    %644 = vmatpush1.msra.mxu0 0.0
    %645 = vmatprep.subr.mxu0 0.0
    %646 = vmatpush1.msra.mxu0 0.0
    %647 = vmatprep.subr.mxu0 0.0
    %648 = vmatpush1.msra.mxu0 0.0
    %649 = vmatprep.subr.mxu0 0.0
    %650 = vmatpush1.msra.mxu0 0.0
    %651 = vmatprep.subr.mxu0 0.0
    %652 = vmatpush1.msra.mxu0 0.0
    %653 = vmatprep.subr.mxu0 0.0
    %654 = vmatpush1.msra.mxu0 0.0
    %655 = vmatprep.subr.mxu0 0.0
    %656 = vmatpush1.msra.mxu0 0.0
    %657 = vmatprep.subr.mxu0 0.0
    %658 = vmatpush1.msra.mxu0 0.0
    %659 = vmatprep.subr.mxu0 0.0
    %660 = vmatpush1.msra.mxu0 0.0
    %661 = vmatprep.mubr.f32.mxu0 0.0
    %v662 = vand.u32 %v210, 4294901760
    %663 = vmatmul.mubr.f32.gmra.mrb[0].mxu0 %v662
    %v664 = vpop.f32.mrb[0].mxu0
    %v665 = vadd.f32 %v571, %v664
    %v666 = vpop.f32.mrb[0].mxu0
    %667 = vmatprep.mubr.f32.mxu0 0.0
    %v668 = vand.u32 %v213, 4294901760
    %669 = vmatmul.mubr.f32.gmra.mrb[0].mxu0 %v668
    %v670 = vpop.f32.mrb[0].mxu0
    %v671 = vadd.f32 %v579, %v670
    %v672 = vpop.f32.mrb[0].mxu0
    %673 = vdwg.mxu0
    %674 = vmatprep.subr.mxu0 0.0
    %v675 = vand.u32 %v203, 4294901760
    %676 = vmatpush1.msra.mxu0 %v675
    %677 = vmatprep.subr.mxu0 0.0
    %v678 = vand.u32 %v204, 4294901760
    %679 = vmatpush1.msra.mxu0 %v678
    %680 = vmatprep.subr.mxu0 0.0
    %v681 = vand.u32 %v205, 4294901760
    %682 = vmatpush1.msra.mxu0 %v681
    %683 = vmatprep.subr.mxu0 0.0
    %v684 = vand.u32 %v206, 4294901760
    %685 = vmatpush1.msra.mxu0 %v684
    %686 = vmatprep.subr.mxu0 0.0
    %v687 = vand.u32 %v207, 4294901760
    %688 = vmatpush1.msra.mxu0 %v687
    %689 = vmatprep.subr.mxu0 0.0
    %690 = vmatpush1.msra.mxu0 0.0
    %691 = vmatprep.subr.mxu0 0.0
    %692 = vmatpush1.msra.mxu0 0.0
    %693 = vmatprep.subr.mxu0 0.0
    %694 = vmatpush1.msra.mxu0 0.0
    %695 = vmatprep.subr.mxu0 0.0
    %696 = vmatpush1.msra.mxu0 0.0
    %697 = vmatprep.subr.mxu0 0.0
    %698 = vmatpush1.msra.mxu0 0.0
    %699 = vmatprep.subr.mxu0 0.0
    %700 = vmatpush1.msra.mxu0 0.0
    %701 = vmatprep.subr.mxu0 0.0
    %702 = vmatpush1.msra.mxu0 0.0
    %703 = vmatprep.subr.mxu0 0.0
    %704 = vmatpush1.msra.mxu0 0.0
    %705 = vmatprep.subr.mxu0 0.0
    %706 = vmatpush1.msra.mxu0 0.0
    %707 = vmatprep.subr.mxu0 0.0
    %708 = vmatpush1.msra.mxu0 0.0
    %709 = vmatprep.subr.mxu0 0.0
    %710 = vmatpush1.msra.mxu0 0.0
    %711 = vmatprep.subr.mxu0 0.0
    %712 = vmatpush1.msra.mxu0 0.0
    %713 = vmatprep.subr.mxu0 0.0
    %714 = vmatpush1.msra.mxu0 0.0
    %715 = vmatprep.subr.mxu0 0.0
    %716 = vmatpush1.msra.mxu0 0.0
    %717 = vmatprep.subr.mxu0 0.0
    %718 = vmatpush1.msra.mxu0 0.0
    %719 = vmatprep.subr.mxu0 0.0
    %720 = vmatpush1.msra.mxu0 0.0
    %721 = vmatprep.subr.mxu0 0.0
    %722 = vmatpush1.msra.mxu0 0.0
    %723 = vmatprep.subr.mxu0 0.0
    %724 = vmatpush1.msra.mxu0 0.0
    %725 = vmatprep.subr.mxu0 0.0
    %726 = vmatpush1.msra.mxu0 0.0
    %727 = vmatprep.subr.mxu0 0.0
    %728 = vmatpush1.msra.mxu0 0.0
    %729 = vmatprep.subr.mxu0 0.0
    %730 = vmatpush1.msra.mxu0 0.0
    %731 = vmatprep.subr.mxu0 0.0
    %732 = vmatpush1.msra.mxu0 0.0
    %733 = vmatprep.subr.mxu0 0.0
    %734 = vmatpush1.msra.mxu0 0.0
    %735 = vmatprep.subr.mxu0 0.0
    %736 = vmatpush1.msra.mxu0 0.0
    %737 = vmatprep.subr.mxu0 0.0
    %738 = vmatpush1.msra.mxu0 0.0
    %739 = vmatprep.subr.mxu0 0.0
    %740 = vmatpush1.msra.mxu0 0.0
    %741 = vmatprep.subr.mxu0 0.0
    %742 = vmatpush1.msra.mxu0 0.0
    %743 = vmatprep.mubr.f32.mxu0 0.0
    %v744 = vand.u32 %v210, 4294901760
    %745 = vmatmul.mubr.f32.gmra.mrb[0].mxu0 %v744
    %v746 = vpop.f32.mrb[0].mxu0
    %v747 = vadd.f32 %v665, %v746
    %v748 = vpop.f32.mrb[0].mxu0
    %749 = vmatprep.mubr.f32.mxu0 0.0
    %v750 = vand.u32 %v213, 4294901760
    %751 = vmatmul.mubr.f32.gmra.mrb[0].mxu0 %v750
    %v752 = vpop.f32.mrb[0].mxu0
    %v753 = vadd.f32 %v671, %v752
    %v754 = vpop.f32.mrb[0].mxu0
    %755 = vdwg.mxu0
    %s756 = smul.u32 16, 1
    %s757 = sshll.u32 %s756, 4
    %758 = dma.done [#allocation3], %s757
    %v759 = vld [vmem:[#allocation2] sm:$0xff]
    %v760 = vld [vmem:[#allocation2 + $0x8] sm:$0xff]
    %v761 = vadd.f32 %v759, %v747
    %v762 = vadd.f32 %v760, %v753
    %763 = vst [vmem:[#allocation9] sm:$0xff] %v761
    %764 = vst [vmem:[#allocation9 + $0x8] sm:$0xff] %v762
    // Predicated region
    $region53: #{tpu_custom_call.1} parent=1 // pred_check
      _
    $region54: #{tpu_custom_call.1} parent=1 // pred_check_branch
      %766 = sbr.rel (0) target = $region56
    $region55: #{tpu_custom_call.1} parent=1 // pred_region
      %s768 = ssub.s32 256, 256
      %769 = vsyncadd [#allocation8], %s768
      %s770 = sshll.u32 [#allocation9], 4
      %s771 = int_to_ptr.vmem [resolvable:$true] %s770
      %776 = dma.vmem_to_hbm [thread:$0]  %s771, 256, %s4, [#allocation8], 128, 128, 8
    $region56: #{tpu_custom_call.1} parent=1 // pred_fallthru
      _
    // Predicated region
    $region57: #{tpu_custom_call.1} parent=1 // pred_check
      _
    $region58: #{tpu_custom_call.1} parent=1 // pred_check_branch
      %778 = sbr.rel (0) target = $region60
    $region59: #{tpu_custom_call.1} parent=1 // pred_region
      %779 = dma.done [#allocation8], 256
    $region60: #{tpu_custom_call.1} parent=1 // pred_fallthru
      _
    %780 = vsyncpa [#allocation7], 1
    %781 = vsyncpa [#allocation8], 1
  %782 = vsyncmov [#allocation3]
  %s783 = vpop.sfrf %782
  %p784 = scmp.eq.s32.totalorder %s783, 0
  %p785 = pneg %p784
  %787 = shalt.err (%p785)

</llo_original>
